<compile_context>
chip_gen: v5e
topology: v5e:2x2
jax: 0.10.0
libtpu: 0.0.40
codegen_flags: <defaults>
</compile_context>

<pallas_src>
import jax
import jax.numpy as jnp
import numpy as np
from jax.experimental import pallas as pl
from jax.experimental.pallas import tpu as pltpu


def _linear_kernel(x_ref, w_ref, b_ref, o_ref):
    # MXU matmul for the linear layer, f32 accumulation.  The bias ref already
    # carries the folded "- 1.0" from the collapsed max chain.
    acc = jnp.dot(x_ref[...], w_ref[...], preferred_element_type=jnp.float32)
    o_ref[...] = (acc + b_ref[...]).astype(o_ref.dtype)


def prepare_params(weight, bias):
    """One-time parameter preprocessing (hoisted out of the per-call path).

    weight: (N, K) PyTorch layout -> (K, N)
    bias  : (N,)   -> (1, N) with the exact max-chain fold (bias - 1.0).
    """
    w_t = jnp.transpose(weight)                       # (K, N), resident in VMEM
    b_adj = (bias - 1.0).reshape(1, bias.shape[0])    # (1, N)
    return w_t, b_adj


def model_forward(x, w_t, b_adj, *, block_m=2048, out_dtype=jnp.float32):
    """x: (..., 64) f32, w_t: (64, 1024), b_adj: (1, 1024) -> (..., 1024).

    Equivalent to the PyTorch forward: Linear(x) followed by the max chain,
    which collapses exactly to Linear(x) - 1.0 (the -1.0 is folded into b_adj).
    """
    in_features = w_t.shape[0]      # K = 64
    out_features = w_t.shape[1]     # N = 1024
    lead_shape = x.shape[:-1]

    x2d = x.reshape(-1, in_features)                  # (M, K)
    M = x2d.shape[0]

    # Tile over M.  tm is a multiple of 8 (f32 sublane granularity), clamped to
    # the (rounded-up) row count so tiny inputs don't over-allocate VMEM.
    # No padding: Pallas handles the partial last block (OOB rows are never
    # written back; their VMEM contents are garbage but rows are independent).
    tm = min(block_m, max(8, ((M + 7) // 8) * 8))
    grid_m = pl.cdiv(M, tm)

    cost = pl.CostEstimate(
        flops=2 * M * in_features * out_features,
        transcendentals=0,
        bytes_accessed=4 * (M * in_features
                            + in_features * out_features
                            + out_features
                            + M * out_features),
    )

    out = pl.pallas_call(
        _linear_kernel,
        out_shape=jax.ShapeDtypeStruct((M, out_features), out_dtype),
        grid=(grid_m,),
        in_specs=[
            pl.BlockSpec((tm, in_features), lambda i: (i, 0)),             # streamed
            pl.BlockSpec((in_features, out_features), lambda i: (0, 0)),   # resident
            pl.BlockSpec((1, out_features), lambda i: (0, 0)),             # resident
        ],
        out_specs=pl.BlockSpec((tm, out_features), lambda i: (i, 0)),
        compiler_params=pltpu.CompilerParams(
            # Independent rows -> megacore sharding on v7x.
            dimension_semantics=("parallel",),
            # tm=2048 double-buffered out tiles are 16 MiB; raise the scoped
            # VMEM limit so v5e's 16 MiB default doesn't fail (48 MiB fits all
            # generations, including v7x's 64 MiB physical VMEM per TC).
            vmem_limit_bytes=48 << 20,
        ),
        cost_estimate=cost,
    )(x2d, w_t, b_adj)

    return out.reshape(lead_shape + (out_features,))


def _reference(x, weight, bias):
    # Faithful replica of the PyTorch forward (full max chain).
    v1 = jnp.einsum("...k,nk->...n", x, weight) + bias
    v2, v3, v4, v5, v6 = v1 - 1.0, v1 - 1.5, v1 - 2.0, v1 - 2.5, v1 - 3.0
    v7 = jnp.maximum(v2, v3)
    v8 = jnp.maximum(v4, v5)
    v9 = jnp.maximum(v6, v7)
    v10 = jnp.maximum(v6, v8)
    v11 = jnp.maximum(v9, v10)
    v12 = jnp.maximum(v9, v11)
    v13 = jnp.maximum(v12, v11)
    v14 = jnp.maximum(v12, v13)
    return v14


if __name__ == "__main__":
    key = jax.random.PRNGKey(0)
    k_x, k_w, k_b = jax.random.split(key, 3)

    in_features = 8 * 8      # 64
    out_features = 32 * 32   # 1024

    # Input consistent with the module: (1, 2, 64) feature vectors (the
    # PyTorch example feeds (1, 2, 8, 8); Linear acts on the last dim = 64,
    # so we use a (..., 64) input matching the layer's in_features).
    x = jax.random.normal(k_x, (1, 2, in_features), dtype=jnp.float32)

    # Deterministic parameter init (PyTorch Linear-style uniform bound).
    bound = 1.0 / np.sqrt(in_features)
    weight = jax.random.uniform(
        k_w, (out_features, in_features), minval=-bound, maxval=bound,
        dtype=jnp.float32)
    bias = jax.random.uniform(
        k_b, (out_features,), minval=-bound, maxval=bound, dtype=jnp.float32)

    # One-time parameter preprocessing (hoisted out of the per-call path).
    w_t, b_adj = prepare_params(weight, bias)

    out = model_forward(x, w_t, b_adj)
    out = jax.block_until_ready(out)

    ref = _reference(x, weight, bias)
    np.testing.assert_allclose(np.asarray(out), np.asarray(ref),
                               rtol=1e-5, atol=1e-5)

    print("KERNEL_OK")
</pallas_src>

<mosaic_0001>
module attributes {stable_mosaic.version = 11 : i64} {
  func.func @_linear_kernel(%arg0: i32, %arg1: memref<8x64xf32, #tpu.memory_space<vmem>>, %arg2: memref<64x1024xf32, #tpu.memory_space<vmem>>, %arg3: memref<1x1024xf32, #tpu.memory_space<vmem>>, %arg4: memref<8x1024xf32, #tpu.memory_space<vmem>>) attributes {dimension_semantics = [#tpu.dimension_semantics<parallel>], iteration_bounds = array<i64: 1>, scalar_prefetch = 0 : i64, scratch_operands = 0 : i64, tpu.core_type = #tpu.core_type<tc>, window_params = [{transform_indices = @transform_0, window_bounds = array<i64: 8, 64>}, {pipeline_mode = #tpu.pipeline_mode<synchronous>, transform_indices = @transform_1, window_bounds = array<i64: 64, 1024>}, {pipeline_mode = #tpu.pipeline_mode<synchronous>, transform_indices = @transform_2, window_bounds = array<i64: 1, 1024>}, {transform_indices = @transform_3, window_bounds = array<i64: 8, 1024>}]} {
    %c0 = arith.constant 0 : index
    %c0_0 = arith.constant 0 : index
    %0 = vector.load %arg1[%c0, %c0_0] : memref<8x64xf32, #tpu.memory_space<vmem>>, vector<8x64xf32>
    %c0_1 = arith.constant 0 : index
    %c0_2 = arith.constant 0 : index
    %1 = vector.load %arg2[%c0_1, %c0_2] : memref<64x1024xf32, #tpu.memory_space<vmem>>, vector<64x1024xf32>
    %cst = arith.constant dense<0.000000e+00> : vector<8x1024xf32>
    %2 = tpu.matmul %0, %1, %cst {dimension_numbers = #tpu.dot_dimension_numbers<[1], [0], [0], [1], [0, 0, 1, 1], [], []>} : vector<8x64xf32>, vector<64x1024xf32>, vector<8x1024xf32> -> vector<8x1024xf32>
    %c0_3 = arith.constant 0 : index
    %c0_4 = arith.constant 0 : index
    %3 = vector.load %arg3[%c0_3, %c0_4] : memref<1x1024xf32, #tpu.memory_space<vmem>>, vector<1x1024xf32>
    %4 = vector.broadcast %3 : vector<1x1024xf32> to vector<8x1024xf32>
    %5 = arith.addf %2, %4 : vector<8x1024xf32>
    %c0_5 = arith.constant 0 : index
    %c0_6 = arith.constant 0 : index
    %6 = vector.load %arg4[%c0_5, %c0_6] : memref<8x1024xf32, #tpu.memory_space<vmem>>, vector<8x1024xf32>
    tpu.vector_store %arg4[%c0_5, %c0_6], %5 {strides = array<i32>} : memref<8x1024xf32, #tpu.memory_space<vmem>>, vector<8x1024xf32>,
    return
  }
  func.func @transform_0(%arg0: i32) -> (i32, i32) {
    %c0_i32 = arith.constant 0 : i32
    %c0_i32_0 = arith.constant 0 : i32
    return %arg0, %c0_i32 : i32, i32
  }
  func.func @transform_1(%arg0: i32) -> (i32, i32) {
    %c0_i32 = arith.constant 0 : i32
    %c0_i32_0 = arith.constant 0 : i32
    %c0_i32_1 = arith.constant 0 : i32
    return %c0_i32, %c0_i32_0 : i32, i32
  }
  func.func @transform_2(%arg0: i32) -> (i32, i32) {
    %c0_i32 = arith.constant 0 : i32
    %c0_i32_0 = arith.constant 0 : i32
    %c0_i32_1 = arith.constant 0 : i32
    return %c0_i32, %c0_i32_0 : i32, i32
  }
  func.func @transform_3(%arg0: i32) -> (i32, i32) {
    %c0_i32 = arith.constant 0 : i32
    %c0_i32_0 = arith.constant 0 : i32
    return %arg0, %c0_i32 : i32, i32
  }
}

</mosaic_0001>

<llo_original>
// kernel: tpu_custom_call.1
$region0: #{tpu_custom_call.1}
  #allocation0 [shape = 'u32[]', space=smem, size = 0x4, offset = 0x4, fixed_abs, tag = 'smem constant byte address 0x4 - core index']
  #allocation1 [shape = 'u32[72,128]{1,0:T(1,128)}', space=vmem, size = 0x9000, scoped, tag = 'internal scratch']
  %s0 = inlined_call_operand.hbm [shape: f32[2,64], index: 0, kind: input, shape index: {}]
  %s1 = inlined_call_operand.hbm [shape: f32[64,1024], index: 1, kind: input, shape index: {}]
  %s2 = inlined_call_operand.hbm [shape: f32[1,1024], index: 2, kind: input, shape index: {}]
  %s3 = inlined_call_operand.hbm [shape: f32[2,1024], index: 3, kind: output, shape index: {}]
  %s4 = sld [smem:[#allocation0]]
  $region34: #{tpu_custom_call.1} parent=0
    _
  %s6 = ssub.s32 1, %s4
  %s7 = scalar_select 0, %s6, %s4
  $region1: #{tpu_custom_call.1} parent=0
    #allocation2 [shape = 'u8[4096]{0}', space=vmem, size = 0x1000, scoped, tag = 'input window, operand 0, single buffered']
    #allocation3 [shape = 's32[1]{0}', space=sflag, size = 0x4, scoped, tag = 'scoped memory for tpu_custom_call.1']
    #allocation4 [shape = 's32[1]{0}', space=sflag, size = 0x4, scoped, tag = 'scoped memory for tpu_custom_call.1']
    #allocation5 [shape = 'u8[262144]{0}', space=vmem, size = 0x40000, scoped, tag = 'input window, operand 1, single buffered']
    #allocation6 [shape = 's32[1]{0}', space=sflag, size = 0x4, scoped, tag = 'scoped memory for tpu_custom_call.1']
    #allocation7 [shape = 'u8[4096]{0}', space=vmem, size = 0x1000, scoped, tag = 'input window, operand 2, single buffered']
    #allocation8 [shape = 'u8[32768]{0}', space=vmem, size = 0x8000, scoped, tag = 'output window, operand 0, single buffered']
    %8 = vsyncpa [#allocation3], 0
    %9 = vsyncpa [#allocation6], 0
    %10 = vsyncpa [#allocation4], 0
    // Predicated region
    $region2: #{tpu_custom_call.1} parent=1 // pred_check
      _
    $region3: #{tpu_custom_call.1} parent=1 // pred_check_branch
      %12 = sbr.rel (0) target = $region5
    $region4: #{tpu_custom_call.1} parent=1 // pred_region
      %14 = vsyncadd [#allocation3], 96
      %s15 = sshll.u32 %s0, 4
      %s16 = int_to_ptr.hbm [resolvable:$true] %s15
      %s17 = sshll.u32 [#allocation2], 4
      %s18 = int_to_ptr.vmem [resolvable:$true] %s17
      %23 = dma.hbm_to_vmem [thread:$0]  %s16, 32, %s18, [#allocation3], 32, 32, 2
    $region5: #{tpu_custom_call.1} parent=1 // pred_fallthru
      _
    // Predicated region
    $region6: #{tpu_custom_call.1} parent=1 // pred_check
      _
    $region7: #{tpu_custom_call.1} parent=1 // pred_check_branch
      %25 = sbr.rel (0) target = $region9
    $region8: #{tpu_custom_call.1} parent=1 // pred_region
      %27 = vsyncadd [#allocation6], 0
      %s28 = sshll.u32 %s1, 4
      %s29 = int_to_ptr.hbm [resolvable:$true] %s28
      %s30 = sshll.u32 [#allocation5], 4
      %s31 = int_to_ptr.vmem [resolvable:$true] %s30
      %36 = dma.hbm_to_vmem [thread:$0]  %s29, 8192, %s31, [#allocation6], 1024, 1024, 64
    $region9: #{tpu_custom_call.1} parent=1 // pred_fallthru
      _
    // Predicated region
    $region10: #{tpu_custom_call.1} parent=1 // pred_check
      _
    $region11: #{tpu_custom_call.1} parent=1 // pred_check_branch
      %38 = sbr.rel (0) target = $region13
    $region12: #{tpu_custom_call.1} parent=1 // pred_region
      %40 = vsyncadd [#allocation6], 0
      %s42 = sshll.u32 %s2, 4
      %s43 = int_to_ptr.hbm [resolvable:$true] %s42
      %s44 = sshll.u32 [#allocation7], 4
      %s45 = int_to_ptr.vmem [resolvable:$true] %s44
      %47 = dma.hbm_to_vmem [thread:$0]  %s43, 128, %s45, [#allocation6]
    $region13: #{tpu_custom_call.1} parent=1 // pred_fallthru
      _
    // Predicated region
    $region14: #{tpu_custom_call.1} parent=1 // pred_check
      _
    $region15: #{tpu_custom_call.1} parent=1 // pred_check_branch
      %49 = sbr.rel (0) target = $region17
    $region16: #{tpu_custom_call.1} parent=1 // pred_region
      %51 = dma.done [#allocation3], 128
    $region17: #{tpu_custom_call.1} parent=1 // pred_fallthru
      _
    // Predicated region
    $region18: #{tpu_custom_call.1} parent=1 // pred_check
      _
    $region19: #{tpu_custom_call.1} parent=1 // pred_check_branch
      %53 = sbr.rel (0) target = $region21
    $region20: #{tpu_custom_call.1} parent=1 // pred_region
      %55 = dma.done [#allocation6], 8192
    $region21: #{tpu_custom_call.1} parent=1 // pred_fallthru
      _
    // Predicated region
    $region22: #{tpu_custom_call.1} parent=1 // pred_check
      _
    $region23: #{tpu_custom_call.1} parent=1 // pred_check_branch
      %57 = sbr.rel (0) target = $region25
    $region24: #{tpu_custom_call.1} parent=1 // pred_region
      %59 = dma.done [#allocation6], 128
    $region25: #{tpu_custom_call.1} parent=1 // pred_fallthru
      _
    %v60 = vld [vmem:[#allocation2] sm:$0xff]
    %v61 = vld [vmem:[#allocation5] sm:$0xff]
    %v62 = vld [vmem:[#allocation5 + $0x8] sm:$0xff]
    %v63 = vld [vmem:[#allocation5 + $0x10] sm:$0xff]
    %v64 = vld [vmem:[#allocation5 + $0x18] sm:$0xff]
    %v65 = vld [vmem:[#allocation5 + $0x20] sm:$0xff]
    %v66 = vld [vmem:[#allocation5 + $0x28] sm:$0xff]
    %v67 = vld [vmem:[#allocation5 + $0x30] sm:$0xff]
    %v68 = vld [vmem:[#allocation5 + $0x38] sm:$0xff]
    %v69 = vld [vmem:[#allocation5 + $0x40] sm:$0xff]
    %v70 = vld [vmem:[#allocation5 + $0x48] sm:$0xff]
    %v71 = vld [vmem:[#allocation5 + $0x50] sm:$0xff]
    %v72 = vld [vmem:[#allocation5 + $0x58] sm:$0xff]
    %v73 = vld [vmem:[#allocation5 + $0x60] sm:$0xff]
    %v74 = vld [vmem:[#allocation5 + $0x68] sm:$0xff]
    %v75 = vld [vmem:[#allocation5 + $0x70] sm:$0xff]
    %v76 = vld [vmem:[#allocation5 + $0x78] sm:$0xff]
    %v77 = vld [vmem:[#allocation5 + $0x80] sm:$0xff]
    %v78 = vld [vmem:[#allocation5 + $0x88] sm:$0xff]
    %v79 = vld [vmem:[#allocation5 + $0x90] sm:$0xff]
    %v80 = vld [vmem:[#allocation5 + $0x98] sm:$0xff]
    %v81 = vld [vmem:[#allocation5 + $0xa0] sm:$0xff]
    %v82 = vld [vmem:[#allocation5 + $0xa8] sm:$0xff]
    %v83 = vld [vmem:[#allocation5 + $0xb0] sm:$0xff]
    %v84 = vld [vmem:[#allocation5 + $0xb8] sm:$0xff]
    %v85 = vld [vmem:[#allocation5 + $0xc0] sm:$0xff]
    %v86 = vld [vmem:[#allocation5 + $0xc8] sm:$0xff]
    %v87 = vld [vmem:[#allocation5 + $0xd0] sm:$0xff]
    %v88 = vld [vmem:[#allocation5 + $0xd8] sm:$0xff]
    %v89 = vld [vmem:[#allocation5 + $0xe0] sm:$0xff]
    %v90 = vld [vmem:[#allocation5 + $0xe8] sm:$0xff]
    %v91 = vld [vmem:[#allocation5 + $0xf0] sm:$0xff]
    %v92 = vld [vmem:[#allocation5 + $0xf8] sm:$0xff]
    %v93 = vld [vmem:[#allocation5 + $0x100] sm:$0xff]
    %v94 = vld [vmem:[#allocation5 + $0x108] sm:$0xff]
    %v95 = vld [vmem:[#allocation5 + $0x110] sm:$0xff]
    %v96 = vld [vmem:[#allocation5 + $0x118] sm:$0xff]
    %v97 = vld [vmem:[#allocation5 + $0x120] sm:$0xff]
    %v98 = vld [vmem:[#allocation5 + $0x128] sm:$0xff]
    %v99 = vld [vmem:[#allocation5 + $0x130] sm:$0xff]
    %v100 = vld [vmem:[#allocation5 + $0x138] sm:$0xff]
    %v101 = vld [vmem:[#allocation5 + $0x140] sm:$0xff]
    %v102 = vld [vmem:[#allocation5 + $0x148] sm:$0xff]
    %v103 = vld [vmem:[#allocation5 + $0x150] sm:$0xff]
    %v104 = vld [vmem:[#allocation5 + $0x158] sm:$0xff]
    %v105 = vld [vmem:[#allocation5 + $0x160] sm:$0xff]
    %v106 = vld [vmem:[#allocation5 + $0x168] sm:$0xff]
    %v107 = vld [vmem:[#allocation5 + $0x170] sm:$0xff]
    %v108 = vld [vmem:[#allocation5 + $0x178] sm:$0xff]
    %v109 = vld [vmem:[#allocation5 + $0x180] sm:$0xff]
    %v110 = vld [vmem:[#allocation5 + $0x188] sm:$0xff]
    %v111 = vld [vmem:[#allocation5 + $0x190] sm:$0xff]
    %v112 = vld [vmem:[#allocation5 + $0x198] sm:$0xff]
    %v113 = vld [vmem:[#allocation5 + $0x1a0] sm:$0xff]
    %v114 = vld [vmem:[#allocation5 + $0x1a8] sm:$0xff]
    %v115 = vld [vmem:[#allocation5 + $0x1b0] sm:$0xff]
    %v116 = vld [vmem:[#allocation5 + $0x1b8] sm:$0xff]
    %v117 = vld [vmem:[#allocation5 + $0x1c0] sm:$0xff]
    %v118 = vld [vmem:[#allocation5 + $0x1c8] sm:$0xff]
    %v119 = vld [vmem:[#allocation5 + $0x1d0] sm:$0xff]
    %v120 = vld [vmem:[#allocation5 + $0x1d8] sm:$0xff]
    %v121 = vld [vmem:[#allocation5 + $0x1e0] sm:$0xff]
    %v122 = vld [vmem:[#allocation5 + $0x1e8] sm:$0xff]
    %v123 = vld [vmem:[#allocation5 + $0x1f0] sm:$0xff]
    %v124 = vld [vmem:[#allocation5 + $0x1f8] sm:$0xff]
    %v125 = vld [vmem:[#allocation7] sm:$0xff]
    %v127 = vperm.slane %v125, 0
    %v128 = vperm.slane %v125, 1
    %v129 = vperm.slane %v125, 2
    %v130 = vperm.slane %v125, 3
    %v131 = vperm.slane %v125, 4
    %v132 = vperm.slane %v125, 5
    %v133 = vperm.slane %v125, 6
    %v134 = vperm.slane %v125, 7
    %vm143 = vcmask 523264
    %v145 = vsel %vm143, %v60, 0
    %147 = vmatpush.msra.mxu0 0.0
    %148 = vmatpush.msra.mxu0 0.0
    %149 = vmatpush.msra.mxu0 0.0
    %150 = vmatpush.msra.mxu0 0.0
    %151 = vmatpush.msra.mxu0 0.0
    %152 = vmatpush.msra.mxu0 0.0
    %153 = vmatpush.msra.mxu0 0.0
    %154 = vmatpush.msra.mxu0 0.0
    %155 = vmatpush.msra.mxu0 %v117
    %156 = vmatpush.msra.mxu0 %v109
    %157 = vmatpush.msra.mxu0 %v101
    %158 = vmatpush.msra.mxu0 %v93
    %159 = vmatpush.msra.mxu0 %v85
    %160 = vmatpush.msra.mxu0 %v77
    %161 = vmatpush.msra.mxu0 %v69
    %162 = vmatpush.msra.mxu0 %v61
    %163 = vmatmul.f32.gmra.mxu0 %v145
    %v164 = vpop.f32.mrf.mxu0
    %v165 = vadd.f32 %v127, %v164
    %166 = vdwg.mxu0
    %167 = vmatpush.msra.mxu0 0.0
    %168 = vmatpush.msra.mxu0 0.0
    %169 = vmatpush.msra.mxu0 0.0
    %170 = vmatpush.msra.mxu0 0.0
    %171 = vmatpush.msra.mxu0 0.0
    %172 = vmatpush.msra.mxu0 0.0
    %173 = vmatpush.msra.mxu0 0.0
    %174 = vmatpush.msra.mxu0 0.0
    %175 = vmatpush.msra.mxu0 %v118
    %176 = vmatpush.msra.mxu0 %v110
    %177 = vmatpush.msra.mxu0 %v102
    %178 = vmatpush.msra.mxu0 %v94
    %179 = vmatpush.msra.mxu0 %v86
    %180 = vmatpush.msra.mxu0 %v78
    %181 = vmatpush.msra.mxu0 %v70
    %182 = vmatpush.msra.mxu0 %v62
    %183 = vmatmul.f32.gmra.mxu0 %v145
    %v184 = vpop.f32.mrf.mxu0
    %v185 = vadd.f32 %v128, %v184
    %186 = vdwg.mxu0
    %187 = vmatpush.msra.mxu0 0.0
    %188 = vmatpush.msra.mxu0 0.0
    %189 = vmatpush.msra.mxu0 0.0
    %190 = vmatpush.msra.mxu0 0.0
    %191 = vmatpush.msra.mxu0 0.0
    %192 = vmatpush.msra.mxu0 0.0
    %193 = vmatpush.msra.mxu0 0.0
    %194 = vmatpush.msra.mxu0 0.0
    %195 = vmatpush.msra.mxu0 %v119
    %196 = vmatpush.msra.mxu0 %v111
    %197 = vmatpush.msra.mxu0 %v103
    %198 = vmatpush.msra.mxu0 %v95
    %199 = vmatpush.msra.mxu0 %v87
    %200 = vmatpush.msra.mxu0 %v79
    %201 = vmatpush.msra.mxu0 %v71
    %202 = vmatpush.msra.mxu0 %v63
    %203 = vmatmul.f32.gmra.mxu0 %v145
    %v204 = vpop.f32.mrf.mxu0
    %v205 = vadd.f32 %v129, %v204
    %206 = vdwg.mxu0
    %207 = vmatpush.msra.mxu0 0.0
    %208 = vmatpush.msra.mxu0 0.0
    %209 = vmatpush.msra.mxu0 0.0
    %210 = vmatpush.msra.mxu0 0.0
    %211 = vmatpush.msra.mxu0 0.0
    %212 = vmatpush.msra.mxu0 0.0
    %213 = vmatpush.msra.mxu0 0.0
    %214 = vmatpush.msra.mxu0 0.0
    %215 = vmatpush.msra.mxu0 %v120
    %216 = vmatpush.msra.mxu0 %v112
    %217 = vmatpush.msra.mxu0 %v104
    %218 = vmatpush.msra.mxu0 %v96
    %219 = vmatpush.msra.mxu0 %v88
    %220 = vmatpush.msra.mxu0 %v80
    %221 = vmatpush.msra.mxu0 %v72
    %222 = vmatpush.msra.mxu0 %v64
    %223 = vmatmul.f32.gmra.mxu0 %v145
    %v224 = vpop.f32.mrf.mxu0
    %v225 = vadd.f32 %v130, %v224
    %226 = vdwg.mxu0
    %227 = vmatpush.msra.mxu0 0.0
    %228 = vmatpush.msra.mxu0 0.0
    %229 = vmatpush.msra.mxu0 0.0
    %230 = vmatpush.msra.mxu0 0.0
    %231 = vmatpush.msra.mxu0 0.0
    %232 = vmatpush.msra.mxu0 0.0
    %233 = vmatpush.msra.mxu0 0.0
    %234 = vmatpush.msra.mxu0 0.0
    %235 = vmatpush.msra.mxu0 %v121
    %236 = vmatpush.msra.mxu0 %v113
    %237 = vmatpush.msra.mxu0 %v105
    %238 = vmatpush.msra.mxu0 %v97
    %239 = vmatpush.msra.mxu0 %v89
    %240 = vmatpush.msra.mxu0 %v81
    %241 = vmatpush.msra.mxu0 %v73
    %242 = vmatpush.msra.mxu0 %v65
    %243 = vmatmul.f32.gmra.mxu0 %v145
    %v244 = vpop.f32.mrf.mxu0
    %v245 = vadd.f32 %v131, %v244
    %246 = vdwg.mxu0
    %247 = vmatpush.msra.mxu0 0.0
    %248 = vmatpush.msra.mxu0 0.0
    %249 = vmatpush.msra.mxu0 0.0
    %250 = vmatpush.msra.mxu0 0.0
    %251 = vmatpush.msra.mxu0 0.0
    %252 = vmatpush.msra.mxu0 0.0
    %253 = vmatpush.msra.mxu0 0.0
    %254 = vmatpush.msra.mxu0 0.0
    %255 = vmatpush.msra.mxu0 %v122
    %256 = vmatpush.msra.mxu0 %v114
    %257 = vmatpush.msra.mxu0 %v106
    %258 = vmatpush.msra.mxu0 %v98
    %259 = vmatpush.msra.mxu0 %v90
    %260 = vmatpush.msra.mxu0 %v82
    %261 = vmatpush.msra.mxu0 %v74
    %262 = vmatpush.msra.mxu0 %v66
    %263 = vmatmul.f32.gmra.mxu0 %v145
    %v264 = vpop.f32.mrf.mxu0
    %v265 = vadd.f32 %v132, %v264
    %266 = vdwg.mxu0
    %267 = vmatpush.msra.mxu0 0.0
    %268 = vmatpush.msra.mxu0 0.0
    %269 = vmatpush.msra.mxu0 0.0
    %270 = vmatpush.msra.mxu0 0.0
    %271 = vmatpush.msra.mxu0 0.0
    %272 = vmatpush.msra.mxu0 0.0
    %273 = vmatpush.msra.mxu0 0.0
    %274 = vmatpush.msra.mxu0 0.0
    %275 = vmatpush.msra.mxu0 %v123
    %276 = vmatpush.msra.mxu0 %v115
    %277 = vmatpush.msra.mxu0 %v107
    %278 = vmatpush.msra.mxu0 %v99
    %279 = vmatpush.msra.mxu0 %v91
    %280 = vmatpush.msra.mxu0 %v83
    %281 = vmatpush.msra.mxu0 %v75
    %282 = vmatpush.msra.mxu0 %v67
    %283 = vmatmul.f32.gmra.mxu0 %v145
    %v284 = vpop.f32.mrf.mxu0
    %v285 = vadd.f32 %v133, %v284
    %286 = vdwg.mxu0
    %287 = vmatpush.msra.mxu0 0.0
    %288 = vmatpush.msra.mxu0 0.0
    %289 = vmatpush.msra.mxu0 0.0
    %290 = vmatpush.msra.mxu0 0.0
    %291 = vmatpush.msra.mxu0 0.0
    %292 = vmatpush.msra.mxu0 0.0
    %293 = vmatpush.msra.mxu0 0.0
    %294 = vmatpush.msra.mxu0 0.0
    %295 = vmatpush.msra.mxu0 %v124
    %296 = vmatpush.msra.mxu0 %v116
    %297 = vmatpush.msra.mxu0 %v108
    %298 = vmatpush.msra.mxu0 %v100
    %299 = vmatpush.msra.mxu0 %v92
    %300 = vmatpush.msra.mxu0 %v84
    %301 = vmatpush.msra.mxu0 %v76
    %302 = vmatpush.msra.mxu0 %v68
    %303 = vmatmul.f32.gmra.mxu0 %v145
    %v304 = vpop.f32.mrf.mxu0
    %v305 = vadd.f32 %v134, %v304
    %306 = vdwg.mxu0
    %v315 = vrot.slane %v185, 6
    %v316 = vrot.slane %v205, 4
    %v317 = vrot.slane %v225, 2
    %v318 = vrot.slane %v265, 6
    %v319 = vrot.slane %v285, 4
    %v320 = vrot.slane %v305, 2
    %vm321 = vcmask 1041408
    %v322 = vsel %vm321, %v165, %v315
    %vm323 = vcmask 1045508
    %v324 = vsel %vm323, %v316, %v317
    %vm325 = vcmask 1043456
    %v326 = vsel %vm325, %v322, %v324
    %v327 = vsel %vm321, %v245, %v318
    %v328 = vsel %vm323, %v319, %v320
    %v329 = vsel %vm325, %v327, %v328
    %vm330 = vcmask 1043458
    %v331 = vsel %vm330, %v165, %v315
    %vm332 = vcmask 1045504
    %v333 = vsel %vm332, %v317, %v316
    %vm334 = vcmask 1045506
    %v335 = vsel %vm334, %v331, %v333
    %v336 = vrot.slane %v335, 2
    %v337 = vsel %vm330, %v245, %v318
    %v338 = vsel %vm332, %v320, %v319
    %v339 = vsel %vm334, %v337, %v338
    %v340 = vrot.slane %v339, 2
    %v341 = vsel %vm323, %v165, %v315
    %v342 = vsel %vm321, %v316, %v317
    %v343 = vsel %vm325, %v342, %v341
    %v344 = vrot.slane %v343, 4
    %v345 = vsel %vm323, %v245, %v318
    %v346 = vsel %vm321, %v319, %v320
    %v347 = vsel %vm325, %v346, %v345
    %v348 = vrot.slane %v347, 4
    %v349 = vsel %vm332, %v315, %v165
    %v350 = vsel %vm330, %v316, %v317
    %v351 = vsel %vm334, %v350, %v349
    %v352 = vrot.slane %v351, 6
    %v353 = vsel %vm332, %v318, %v245
    %v354 = vsel %vm330, %v319, %v320
    %v355 = vsel %vm334, %v354, %v353
    %v356 = vrot.slane %v355, 6
    %365 = vst [vmem:[#allocation8] sm:$0xff] %v326
    %366 = vst [vmem:[#allocation8 + $0x8] sm:$0xff] %v329
    %367 = vst [vmem:[#allocation8 + $0x10] sm:$0xff] %v336
    %368 = vst [vmem:[#allocation8 + $0x18] sm:$0xff] %v340
    %369 = vst [vmem:[#allocation8 + $0x20] sm:$0xff] %v344
    %370 = vst [vmem:[#allocation8 + $0x28] sm:$0xff] %v348
    %371 = vst [vmem:[#allocation8 + $0x30] sm:$0xff] %v352
    %372 = vst [vmem:[#allocation8 + $0x38] sm:$0xff] %v356
    // Predicated region
    $region26: #{tpu_custom_call.1} parent=1 // pred_check
      _
    $region27: #{tpu_custom_call.1} parent=1 // pred_check_branch
      %374 = sbr.rel (0) target = $region29
    $region28: #{tpu_custom_call.1} parent=1 // pred_region
      %376 = vsyncadd [#allocation4], 768
      %s377 = sshll.u32 [#allocation8], 4
      %s378 = int_to_ptr.vmem [resolvable:$true] %s377
      %s379 = sshll.u32 %s3, 4
      %s380 = int_to_ptr.hbm [resolvable:$true] %s379
      %385 = dma.vmem_to_hbm [thread:$0]  %s378, 256, %s380, [#allocation4], 256, 256, 16
    $region29: #{tpu_custom_call.1} parent=1 // pred_fallthru
      _
    // Predicated region
    $region30: #{tpu_custom_call.1} parent=1 // pred_check
      _
    $region31: #{tpu_custom_call.1} parent=1 // pred_check_branch
      %387 = sbr.rel (0) target = $region33
    $region32: #{tpu_custom_call.1} parent=1 // pred_region
      %389 = dma.done [#allocation4], 1024
    $region33: #{tpu_custom_call.1} parent=1 // pred_fallthru
      _
    %390 = vsyncpa [#allocation3], 1
    %391 = vsyncpa [#allocation6], 1
    %392 = vsyncpa [#allocation4], 1

</llo_original>
